<compile_context>
chip_gen: v7x
topology: tpu7x:2x2x1
jax: 0.10.0
libtpu: 0.0.40
codegen_flags: <defaults>
</compile_context>

<pallas_src>
import functools
import math

import jax
import jax.numpy as jnp
from jax.experimental import pallas as pl
from jax.experimental.pallas import tpu as pltpu

LANES = 128
SUBLANES = 8


@functools.lru_cache(maxsize=None)
def _pick_block_config():
    """Return (max_block_rows, vmem_limit_bytes) sized for the local chip.

    v5e/v6e: 128 MiB physical VMEM -> 8192-row (4 MiB) blocks with the scoped
    VMEM limit raised to 64 MiB.  v7x (64 MiB physical) or unknown: 4096 rows
    and a 40 MiB limit, leaving headroom for in-kernel intermediates.
    """
    try:
        phys = getattr(pltpu.get_tpu_info(), "vmem_capacity_bytes", None)
    except Exception:
        phys = None
    if phys is not None and phys >= 100 * 1024 * 1024:
        return 8192, 64 * 1024 * 1024
    return 4096, 40 * 1024 * 1024


def _attention_loss_kernel(pred_ref, gt_ref, out_ref, acc_g, acc_a, acc_t, *,
                           beta, gamma, block_rows, per_core, valid_rows,
                           needs_mask, vector_acc, bf16_beta_pow):
    """Accumulates [sum(gt), sum(term*gt), sum(term)] per parallel partition.

    term = beta**((1-q)**gamma) * log(q),  q = pred if gt==1 else 1-pred.
    Masked / zero-padded elements (pred=0, gt=0) give q=1 -> term=0, so they
    contribute nothing to any of the three sums.
    """
    p = pl.program_id(0)
    c = pl.program_id(1)

    pred = pred_ref[...].astype(jnp.float32)
    gt = gt_ref[...].astype(jnp.float32)      # gt may arrive as int8/uint8/bool

    if needs_mask:
        # Ragged last block and/or duplicated overhang block (clamped
        # index_map): zero pred & gt BEFORE any arithmetic so out-of-bounds
        # garbage never reaches the transcendentals or the gt sum.
        g = p * per_core + c                               # unclamped block id
        row_ids = g * block_rows + jax.lax.broadcasted_iota(
            jnp.int32, pred.shape, 0)
        valid = row_ids < valid_rows
        pred = jnp.where(valid, pred, 0.0)
        gt = jnp.where(valid, gt, 0.0)

    # Fused edge/background branch (gt is binary {0, 1}).
    q = jnp.where(gt > 0.5, pred, 1.0 - pred)
    one_m_q = 1.0 - q
    if bf16_beta_pow:
        # v6e/v7x EUP saver: beta**(.) is a smooth weight in [1, beta], so
        # bf16 is numerically benign there; log(q) stays in f32.
        omq = one_m_q.astype(jnp.bfloat16)
        if gamma == 0.5:
            powed = jnp.sqrt(omq)
        else:
            powed = jnp.exp(jnp.bfloat16(gamma) * jnp.log(omq))
        beta_pow = jnp.exp(jnp.bfloat16(math.log(beta)) * powed).astype(
            jnp.float32)
    else:
        if gamma == 0.5:
            powed = jnp.sqrt(one_m_q)                      # single EUP sqrt
        else:
            powed = jnp.exp(jnp.float32(gamma) * jnp.log(one_m_q))
        beta_pow = jnp.exp(jnp.float32(math.log(beta)) * powed)  # beta**powed
    term = beta_pow * jnp.log(q)

    if vector_acc:
        @pl.when(c == 0)
        def _init():
            acc_g[...] = jnp.zeros_like(acc_g)
            acc_a[...] = jnp.zeros_like(acc_a)
            acc_t[...] = jnp.zeros_like(acc_t)

        # Per-lane partial sums into (8, 128) vector accumulators (VPU only).
        k = block_rows // SUBLANES
        t3 = term.reshape(k, SUBLANES, LANES)
        g3 = gt.reshape(k, SUBLANES, LANES)
        acc_g[...] += jnp.sum(g3, axis=0)          # sum(gt)
        acc_a[...] += jnp.sum(t3 * g3, axis=0)     # sum(term * gt)
        acc_t[...] += jnp.sum(t3, axis=0)          # sum(term)

        # Cross-lane reduce + scalar SMEM write only on the final chunk.
        @pl.when(c == pl.num_programs(1) - 1)
        def _finalize():
            out_ref[0, 0] = jnp.sum(acc_g[...])
            out_ref[0, 1] = jnp.sum(acc_a[...])
            out_ref[0, 2] = jnp.sum(acc_t[...])
    else:
        # Tiny single-block fallback (rows < 32 and not a multiple of 8).
        out_ref[0, 0] = jnp.sum(gt)
        out_ref[0, 1] = jnp.sum(term * gt)
        out_ref[0, 2] = jnp.sum(term)


def attention_loss(pred, gt, beta=4.0, gamma=0.5, bf16_beta_pow=False):
    """Pallas TPU implementation of MixNet AttentionLoss.forward(pred, gt).

    gt must be a binary {0,1} edge map; passing it as int8/uint8/bool streams
    1 B/elem instead of 4 B/elem on the mem-bound path.
    """
    assert pred.shape == gt.shape
    n = int(pred.size)
    assert n > 0

    pred_f = pred.reshape(-1)
    gt_f = gt.reshape(-1)

    # Lane-align so the (rows, 128) reshape is a free bitcast for typical
    # NCHW sizes.  Zero padding (pred=0, gt=0) contributes nothing.
    rem = n % LANES
    if rem:
        # TODO(synk): this <=127-element zero pad still costs one XLA copy for
        # truly ragged sizes; a fully copy-free path needs manual 1-D DMA.
        pad = LANES - rem
        pred_f = jnp.pad(pred_f, (0, pad))
        gt_f = jnp.pad(gt_f, (0, pad))
    rows = pl.cdiv(n, LANES)

    pred2 = pred_f.reshape(rows, LANES)
    gt2 = gt_f.reshape(rows, LANES)

    max_block_rows, vmem_limit = _pick_block_config()
    if rows >= max_block_rows:
        block_rows = max_block_rows                 # multiple of 32
    elif rows >= 32:
        block_rows = (rows // 32) * 32              # int8 (32,128)-tile safe
    else:
        block_rows = rows                           # full-dim escape, tiny

    num_blocks = pl.cdiv(rows, block_rows)
    num_parallel = 2 if num_blocks >= 2 else 1      # feed both v7x TCs
    per_core = pl.cdiv(num_blocks, num_parallel)
    needs_mask = (num_parallel * per_core * block_rows) != rows
    vector_acc = (block_rows % SUBLANES == 0)

    def in_index_map(p, c):
        # Clamp so the duplicated overhang block (odd num_blocks, 2 cores)
        # stays in bounds; its contribution is zeroed in-kernel.
        return (jnp.minimum(p * per_core + c, num_blocks - 1), 0)

    in_spec = pl.BlockSpec((block_rows, LANES), in_index_map)

    kernel = functools.partial(
        _attention_loss_kernel,
        beta=float(beta), gamma=float(gamma), block_rows=block_rows,
        per_core=per_core, valid_rows=rows, needs_mask=needs_mask,
        vector_acc=vector_acc, bf16_beta_pow=bf16_beta_pow)

    sums = pl.pallas_call(
        kernel,
        out_shape=jax.ShapeDtypeStruct((num_parallel, 3), jnp.float32),
        grid_spec=pltpu.PrefetchScalarGridSpec(
            num_scalar_prefetch=0,
            grid=(num_parallel, per_core),
            in_specs=[in_spec, in_spec],
            out_specs=pl.BlockSpec((1, 3), lambda p, c: (p, 0),
                                   memory_space=pltpu.SMEM),
            scratch_shapes=[pltpu.VMEM((SUBLANES, LANES), jnp.float32)] * 3,
        ),
        compiler_params=pltpu.CompilerParams(
            dimension_semantics=("parallel", "arbitrary"),
            vmem_limit_bytes=vmem_limit),
    )(pred2, gt2)

    totals = jnp.sum(sums, axis=0)
    s_gt, s_a, s_t = totals[0], totals[1], totals[2]
    s_b = s_t - s_a                   # sum(term * (1 - gt)) for binary gt

    n_f = jnp.float32(n)
    alpha = (n_f - s_gt) / n_f        # num_neg / (num_pos + num_neg)
    # TODO(synk): like the PyTorch module, pred exactly 0 or 1 yields inf/nan
    # in the reference; the fused kernel stays finite there (no clamp added).
    return -(alpha * s_a + (1.0 - alpha) * s_b) / n_f


def _reference_attention_loss(pred, gt, beta=4.0, gamma=0.5):
    pred = pred.astype(jnp.float32)
    gt = gt.astype(jnp.float32)
    num_pos = jnp.sum(gt)
    num_neg = jnp.sum(1.0 - gt)
    alpha = num_neg / (num_pos + num_neg)
    edge_beta = jnp.power(beta, jnp.power(1.0 - pred, gamma))
    bg_beta = jnp.power(beta, jnp.power(pred, gamma))
    loss = -alpha * edge_beta * jnp.log(pred) * gt
    loss = loss - (1.0 - alpha) * bg_beta * jnp.log(1.0 - pred) * (1.0 - gt)
    return jnp.mean(loss)


if __name__ == "__main__":
    key = jax.random.PRNGKey(0)

    def _make(shape, key, gt_dtype):
        k_pred, k_gt = jax.random.split(key)
        # pred strictly inside (0, 1) so log() is finite (same as torch usage).
        pred = jax.random.uniform(k_pred, shape, jnp.float32,
                                  minval=0.05, maxval=0.95)
        gt = (jax.random.uniform(k_gt, shape, jnp.float32) > 0.7)
        return pred, gt.astype(gt_dtype)

    def _check(shape, key, gt_dtype):
        pred, gt = _make(shape, key, gt_dtype)
        out = jax.block_until_ready(attention_loss(pred, gt, 4.0, 0.5))
        ref = jax.block_until_ready(
            _reference_attention_loss(pred, gt.astype(jnp.float32), 4.0, 0.5))
        assert jnp.allclose(out, ref, rtol=1e-4, atol=1e-5), (shape, out, ref)

    keys = jax.random.split(key, 4)
    # 1) Nominal NCHW module input: single small block, f32 gt.
    _check((2, 4, 16, 16), keys[0], jnp.float32)
    # 2) Ragged size + int8 gt: lane pad, partial-block mask, 2-way split.
    _check((1, 3, 50, 50), keys[1], jnp.int8)
    # 3) Larger input + int8 gt: multi-block grid, masked tail / overhang.
    _check((2, 4, 368, 368), keys[2], jnp.int8)
    # 4) Tiny row count not a multiple of 8: direct-sum fallback path.
    _check((1, 1, 10, 128), keys[3], jnp.float32)

    print("KERNEL_OK")
</pallas_src>

<mosaic_0001>
module attributes {stable_mosaic.version = 11 : i64} {
  func.func @_attention_loss_kernel(%arg0: i32, %arg1: i32, %arg2: memref<16x128xf32, #tpu.memory_space<vmem>>, %arg3: memref<16x128xf32, #tpu.memory_space<vmem>>, %arg4: memref<1x3xf32, #tpu.memory_space<smem>>, %arg5: memref<8x128xf32, #tpu.memory_space<vmem>>, %arg6: memref<8x128xf32, #tpu.memory_space<vmem>>, %arg7: memref<8x128xf32, #tpu.memory_space<vmem>>) attributes {dimension_semantics = [#tpu.dimension_semantics<parallel>, #tpu.dimension_semantics<arbitrary>], iteration_bounds = array<i64: 1, 1>, scalar_prefetch = 0 : i64, scratch_operands = 3 : i64, tpu.core_type = #tpu.core_type<tc>, window_params = [{transform_indices = @transform_0, window_bounds = array<i64: 16, 128>}, {transform_indices = @transform_1, window_bounds = array<i64: 16, 128>}, {transform_indices = @transform_2, window_bounds = array<i64: 1, 3>}]} {
    %c0 = arith.constant 0 : index
    %c0_0 = arith.constant 0 : index
    %0 = vector.load %arg2[%c0, %c0_0] : memref<16x128xf32, #tpu.memory_space<vmem>>, vector<16x128xf32>
    %c0_1 = arith.constant 0 : index
    %c0_2 = arith.constant 0 : index
    %1 = vector.load %arg3[%c0_1, %c0_2] : memref<16x128xf32, #tpu.memory_space<vmem>>, vector<16x128xf32>
    %cst = arith.constant 5.000000e-01 : f32
    %2 = vector.broadcast %cst : f32 to vector<16x128xf32>
    %3 = arith.cmpf ogt, %1, %2 : vector<16x128xf32>
    %cst_3 = arith.constant 1.000000e+00 : f32
    %4 = vector.broadcast %cst_3 : f32 to vector<16x128xf32>
    %5 = arith.subf %4, %0 : vector<16x128xf32>
    %6 = arith.select %3, %0, %5 : vector<16x128xi1>, vector<16x128xf32>
    %cst_4 = arith.constant 1.000000e+00 : f32
    %7 = vector.broadcast %cst_4 : f32 to vector<16x128xf32>
    %8 = arith.subf %7, %6 : vector<16x128xf32>
    %9 = math.sqrt %8 : vector<16x128xf32>
    %cst_5 = arith.constant 1.38629436 : f32
    %10 = vector.broadcast %cst_5 : f32 to vector<16x128xf32>
    %11 = arith.mulf %10, %9 : vector<16x128xf32>
    %12 = math.exp %11 : vector<16x128xf32>
    %13 = math.log %6 : vector<16x128xf32>
    %14 = arith.mulf %12, %13 : vector<16x128xf32>
    %c0_i32 = arith.constant 0 : i32
    %15 = arith.cmpi eq, %arg1, %c0_i32 : i32
    %16 = arith.extui %15 : i1 to i32
    %c0_i32_6 = arith.constant 0 : i32
    %17 = arith.cmpi ne, %16, %c0_i32_6 : i32
    scf.if %17 {
      %cst_24 = arith.constant 0.000000e+00 : f32
      %36 = vector.broadcast %cst_24 : f32 to vector<8x128xf32>
      %c0_25 = arith.constant 0 : index
      %c0_26 = arith.constant 0 : index
      %37 = vector.load %arg5[%c0_25, %c0_26] : memref<8x128xf32, #tpu.memory_space<vmem>>, vector<8x128xf32>
      tpu.vector_store %arg5[%c0_25, %c0_26], %36 {strides = array<i32>} : memref<8x128xf32, #tpu.memory_space<vmem>>, vector<8x128xf32>,
      %cst_27 = arith.constant 0.000000e+00 : f32
      %38 = vector.broadcast %cst_27 : f32 to vector<8x128xf32>
      %c0_28 = arith.constant 0 : index
      %c0_29 = arith.constant 0 : index
      %39 = vector.load %arg6[%c0_28, %c0_29] : memref<8x128xf32, #tpu.memory_space<vmem>>, vector<8x128xf32>
      tpu.vector_store %arg6[%c0_28, %c0_29], %38 {strides = array<i32>} : memref<8x128xf32, #tpu.memory_space<vmem>>, vector<8x128xf32>,
      %cst_30 = arith.constant 0.000000e+00 : f32
      %40 = vector.broadcast %cst_30 : f32 to vector<8x128xf32>
      %c0_31 = arith.constant 0 : index
      %c0_32 = arith.constant 0 : index
      %41 = vector.load %arg7[%c0_31, %c0_32] : memref<8x128xf32, #tpu.memory_space<vmem>>, vector<8x128xf32>
      tpu.vector_store %arg7[%c0_31, %c0_32], %40 {strides = array<i32>} : memref<8x128xf32, #tpu.memory_space<vmem>>, vector<8x128xf32>,
    } else {
    }
    %18 = vector.shape_cast %14 : vector<16x128xf32> to vector<2x8x128xf32>
    %19 = vector.shape_cast %1 : vector<16x128xf32> to vector<2x8x128xf32>
    %c0_7 = arith.constant 0 : index
    %c0_8 = arith.constant 0 : index
    %20 = vector.load %arg5[%c0_7, %c0_8] : memref<8x128xf32, #tpu.memory_space<vmem>>, vector<8x128xf32>
    %cst_9 = arith.constant dense<0.000000e+00> : vector<8x128xf32>
    %21 = vector.multi_reduction <add>, %19, %cst_9 [0] : vector<2x8x128xf32> to vector<8x128xf32>
    %22 = arith.addf %20, %21 : vector<8x128xf32>
    %c0_10 = arith.constant 0 : index
    %c0_11 = arith.constant 0 : index
    %23 = vector.load %arg5[%c0_10, %c0_11] : memref<8x128xf32, #tpu.memory_space<vmem>>, vector<8x128xf32>
    tpu.vector_store %arg5[%c0_10, %c0_11], %22 {strides = array<i32>} : memref<8x128xf32, #tpu.memory_space<vmem>>, vector<8x128xf32>,
    %c0_12 = arith.constant 0 : index
    %c0_13 = arith.constant 0 : index
    %24 = vector.load %arg6[%c0_12, %c0_13] : memref<8x128xf32, #tpu.memory_space<vmem>>, vector<8x128xf32>
    %25 = arith.mulf %18, %19 : vector<2x8x128xf32>
    %cst_14 = arith.constant dense<0.000000e+00> : vector<8x128xf32>
    %26 = vector.multi_reduction <add>, %25, %cst_14 [0] : vector<2x8x128xf32> to vector<8x128xf32>
    %27 = arith.addf %24, %26 : vector<8x128xf32>
    %c0_15 = arith.constant 0 : index
    %c0_16 = arith.constant 0 : index
    %28 = vector.load %arg6[%c0_15, %c0_16] : memref<8x128xf32, #tpu.memory_space<vmem>>, vector<8x128xf32>
    tpu.vector_store %arg6[%c0_15, %c0_16], %27 {strides = array<i32>} : memref<8x128xf32, #tpu.memory_space<vmem>>, vector<8x128xf32>,
    %c0_17 = arith.constant 0 : index
    %c0_18 = arith.constant 0 : index
    %29 = vector.load %arg7[%c0_17, %c0_18] : memref<8x128xf32, #tpu.memory_space<vmem>>, vector<8x128xf32>
    %cst_19 = arith.constant dense<0.000000e+00> : vector<8x128xf32>
    %30 = vector.multi_reduction <add>, %18, %cst_19 [0] : vector<2x8x128xf32> to vector<8x128xf32>
    %31 = arith.addf %29, %30 : vector<8x128xf32>
    %c0_20 = arith.constant 0 : index
    %c0_21 = arith.constant 0 : index
    %32 = vector.load %arg7[%c0_20, %c0_21] : memref<8x128xf32, #tpu.memory_space<vmem>>, vector<8x128xf32>
    tpu.vector_store %arg7[%c0_20, %c0_21], %31 {strides = array<i32>} : memref<8x128xf32, #tpu.memory_space<vmem>>, vector<8x128xf32>,
    %c0_i32_22 = arith.constant 0 : i32
    %33 = arith.cmpi eq, %arg1, %c0_i32_22 : i32
    %34 = arith.extui %33 : i1 to i32
    %c0_i32_23 = arith.constant 0 : i32
    %35 = arith.cmpi ne, %34, %c0_i32_23 : i32
    scf.if %35 {
      %c0_24 = arith.constant 0 : index
      %c0_25 = arith.constant 0 : index
      %36 = vector.load %arg5[%c0_24, %c0_25] : memref<8x128xf32, #tpu.memory_space<vmem>>, vector<8x128xf32>
      %37 = vector.shape_cast %36 : vector<8x128xf32> to vector<1x8x128xf32>
      %cst_26 = arith.constant dense<0.000000e+00> : vector<1xf32>
      %38 = vector.multi_reduction <add>, %37, %cst_26 [1, 2] : vector<1x8x128xf32> to vector<1xf32>
      %39 = vector.shape_cast %38 : vector<1xf32> to vector<1x1x1xf32>
      %40 = vector.extract %39[0, 0, 0] : f32 from vector<1x1x1xf32>
      %c0_27 = arith.constant 0 : index
      %c0_28 = arith.constant 0 : index
      %41 = memref.load %arg4[%c0_27, %c0_28] : memref<1x3xf32, #tpu.memory_space<smem>>
      memref.store %40, %arg4[%c0_27, %c0_28] : memref<1x3xf32, #tpu.memory_space<smem>>
      %c0_29 = arith.constant 0 : index
      %c0_30 = arith.constant 0 : index
      %42 = vector.load %arg6[%c0_29, %c0_30] : memref<8x128xf32, #tpu.memory_space<vmem>>, vector<8x128xf32>
      %43 = vector.shape_cast %42 : vector<8x128xf32> to vector<1x8x128xf32>
      %cst_31 = arith.constant dense<0.000000e+00> : vector<1xf32>
      %44 = vector.multi_reduction <add>, %43, %cst_31 [1, 2] : vector<1x8x128xf32> to vector<1xf32>
      %45 = vector.shape_cast %44 : vector<1xf32> to vector<1x1x1xf32>
      %46 = vector.extract %45[0, 0, 0] : f32 from vector<1x1x1xf32>
      %c0_32 = arith.constant 0 : index
      %c1 = arith.constant 1 : index
      %47 = memref.load %arg4[%c0_32, %c1] : memref<1x3xf32, #tpu.memory_space<smem>>
      memref.store %46, %arg4[%c0_32, %c1] : memref<1x3xf32, #tpu.memory_space<smem>>
      %c0_33 = arith.constant 0 : index
      %c0_34 = arith.constant 0 : index
      %48 = vector.load %arg7[%c0_33, %c0_34] : memref<8x128xf32, #tpu.memory_space<vmem>>, vector<8x128xf32>
      %49 = vector.shape_cast %48 : vector<8x128xf32> to vector<1x8x128xf32>
      %cst_35 = arith.constant dense<0.000000e+00> : vector<1xf32>
      %50 = vector.multi_reduction <add>, %49, %cst_35 [1, 2] : vector<1x8x128xf32> to vector<1xf32>
      %51 = vector.shape_cast %50 : vector<1xf32> to vector<1x1x1xf32>
      %52 = vector.extract %51[0, 0, 0] : f32 from vector<1x1x1xf32>
      %c0_36 = arith.constant 0 : index
      %c2 = arith.constant 2 : index
      %53 = memref.load %arg4[%c0_36, %c2] : memref<1x3xf32, #tpu.memory_space<smem>>
      memref.store %52, %arg4[%c0_36, %c2] : memref<1x3xf32, #tpu.memory_space<smem>>
    } else {
    }
    return
  }
  func.func @transform_0(%arg0: i32, %arg1: i32) -> (i32, i32) {
    %c1_i32 = arith.constant 1 : i32
    %0 = arith.muli %arg0, %c1_i32 : i32
    %1 = arith.addi %0, %arg1 : i32
    %c0_i32 = arith.constant 0 : i32
    %2 = arith.minsi %1, %c0_i32 : i32
    %c0_i32_0 = arith.constant 0 : i32
    %c0_i32_1 = arith.constant 0 : i32
    return %2, %c0_i32_0 : i32, i32
  }
  func.func @transform_1(%arg0: i32, %arg1: i32) -> (i32, i32) {
    %c1_i32 = arith.constant 1 : i32
    %0 = arith.muli %arg0, %c1_i32 : i32
    %1 = arith.addi %0, %arg1 : i32
    %c0_i32 = arith.constant 0 : i32
    %2 = arith.minsi %1, %c0_i32 : i32
    %c0_i32_0 = arith.constant 0 : i32
    %c0_i32_1 = arith.constant 0 : i32
    return %2, %c0_i32_0 : i32, i32
  }
  func.func @transform_2(%arg0: i32, %arg1: i32) -> (i32, i32) {
    %c0_i32 = arith.constant 0 : i32
    %c0_i32_0 = arith.constant 0 : i32
    return %arg0, %c0_i32 : i32, i32
  }
}

</mosaic_0001>

<llo_original>
// kernel: tpu_custom_call.1
$region0: #{tpu_custom_call.1}
  #allocation0 [shape = 'u32[]', space=smem, size = 0x4, offset = 0x4, fixed_abs, tag = 'smem constant byte address 0x4 - core index']
  #allocation1 [shape = 'u32[144,128]{1,0:T(1,128)}', space=vmem, size = 0x12000, scoped, tag = 'internal scratch']
  #allocation2 [shape = 'f32[8,128]{1,0:T(8,128)}', space=vmem, size = 0x1000, scoped, tag = 'scratch operand']
  #allocation3 [shape = 'f32[8,128]{1,0:T(8,128)}', space=vmem, size = 0x1000, scoped, tag = 'scratch operand']
  #allocation4 [shape = 'f32[8,128]{1,0:T(8,128)}', space=vmem, size = 0x1000, scoped, tag = 'scratch operand']
  %s0 = inlined_call_operand.hbm [shape: f32[16,128], index: 0, kind: input, shape index: {}]
  %s1 = inlined_call_operand.hbm [shape: f32[16,128], index: 1, kind: input, shape index: {}]
  %s2 = inlined_call_operand.hbm [shape: f32[1,3], index: 2, kind: output, shape index: {}]
  %s3 = sld [smem:[#allocation0]]
  $region34: #{tpu_custom_call.1} parent=0
    _
  %s5 = ssub.s32 1, %s3
  %s6 = scalar_select 0, %s5, %s3
  $region1: #{tpu_custom_call.1} parent=0
    #allocation5 [shape = 'u8[8192]{0}', space=vmem, size = 0x2000, scoped, tag = 'input window, operand 0, single buffered']
    #allocation6 [shape = 's32[1]{0}', space=sflag, size = 0x4, scoped, tag = 'scoped memory for tpu_custom_call.1']
    #allocation7 [shape = 's32[1]{0}', space=sflag, size = 0x4, scoped, tag = 'scoped memory for tpu_custom_call.1']
    #allocation8 [shape = 'u8[8192]{0}', space=vmem, size = 0x2000, scoped, tag = 'input window, operand 1, single buffered']
    #allocation9 [shape = 's32[1]{0}', space=sflag, size = 0x4, scoped, tag = 'scoped memory for tpu_custom_call.1']
    #allocation10 [shape = 'u8[512]{0}', space=smem, size = 0x200, scoped, tag = 'output window, operand 0, single buffered']
    %7 = vsyncpa [#allocation6], 0
    %8 = vsyncpa [#allocation9], 0
    %9 = vsyncpa [#allocation7], 0
    // Predicated region
    $region2: #{tpu_custom_call.1} parent=1 // pred_check
      _
    $region3: #{tpu_custom_call.1} parent=1 // pred_check_branch
      %11 = sbr.rel (0) target = $region5
    $region4: #{tpu_custom_call.1} parent=1 // pred_region
      %s12 = sadd.s32 0, 0
      %p13 = scmp.lt.s32.totalorder %s12, 0
      %s14 = scalar_select %p13, %s12, 0
      %s15 = smul.u32 2, %s14
      %s17 = ssub.s32 256, 256
      %18 = vsyncadd [#allocation6], %s17
      %s19 = smul.addr %s15, 128
      %s20 = scalar_lea.hbm %s0, %s19
      %s21 = sshll.u32 [#allocation5], 4
      %s22 = int_to_ptr.vmem [resolvable:$true] %s21
      %27 = dma.hbm_to_vmem [thread:$0]  %s20, 256, %s22, [#allocation6], 128, 128, 8
    $region5: #{tpu_custom_call.1} parent=1 // pred_fallthru
      _
    // Predicated region
    $region6: #{tpu_custom_call.1} parent=1 // pred_check
      _
    $region7: #{tpu_custom_call.1} parent=1 // pred_check_branch
      %29 = sbr.rel (0) target = $region9
    $region8: #{tpu_custom_call.1} parent=1 // pred_region
      %s30 = sadd.s32 0, 0
      %p31 = scmp.lt.s32.totalorder %s30, 0
      %s32 = scalar_select %p31, %s30, 0
      %s33 = smul.u32 2, %s32
      %s35 = ssub.s32 256, 256
      %36 = vsyncadd [#allocation9], %s35
      %s37 = smul.addr %s33, 128
      %s38 = scalar_lea.hbm %s1, %s37
      %s39 = sshll.u32 [#allocation8], 4
      %s40 = int_to_ptr.vmem [resolvable:$true] %s39
      %45 = dma.hbm_to_vmem [thread:$0]  %s38, 256, %s40, [#allocation9], 128, 128, 8
    $region9: #{tpu_custom_call.1} parent=1 // pred_fallthru
      _
    // Predicated region
    $region10: #{tpu_custom_call.1} parent=1 // pred_check
      _
    $region11: #{tpu_custom_call.1} parent=1 // pred_check_branch
      %47 = sbr.rel (0) target = $region13
    $region12: #{tpu_custom_call.1} parent=1 // pred_region
      %48 = dma.done [#allocation6], 256
    $region13: #{tpu_custom_call.1} parent=1 // pred_fallthru
      _
    // Predicated region
    $region14: #{tpu_custom_call.1} parent=1 // pred_check
      _
    $region15: #{tpu_custom_call.1} parent=1 // pred_check_branch
      %50 = sbr.rel (0) target = $region17
    $region16: #{tpu_custom_call.1} parent=1 // pred_region
      %51 = dma.done [#allocation9], 256
    $region17: #{tpu_custom_call.1} parent=1 // pred_fallthru
      _
    %s52 = sadd.s32 0, 0
    %p53 = scmp.lt.s32.totalorder %s52, 0
    %s54 = scalar_select %p53, %s52, 0
    %s55 = smul.u32 2, %s54
    %s56 = sadd.s32 0, 0
    %p57 = scmp.lt.s32.totalorder %s56, 0
    %s58 = scalar_select %p57, %s56, 0
    %s59 = smul.u32 2, %s58
    %v60 = vld [vmem:[#allocation5] sm:$0xff]
    %v61 = vld [vmem:[#allocation5 + $0x8] sm:$0xff]
    %v62 = vld [vmem:[#allocation8] sm:$0xff]
    %v63 = vld [vmem:[#allocation8 + $0x8] sm:$0xff]
    %vm64 = vcmp.gt.f32.partialorder %v62, 0.5
    %vm65 = vcmp.gt.f32.partialorder %v63, 0.5
    %v66 = vsub.f32 1.0, %v60
    %v67 = vsub.f32 1.0, %v61
    %v68 = vsel %vm64, %v60, %v66
    %v69 = vsel %vm65, %v61, %v67
    %v70 = vsub.f32 1.0, %v68
    %v71 = vsub.f32 1.0, %v69
    %v72 = vrsqrt.pop %v70
    %v73 = vmul.f32 %v70, %v72
    %vm74 = vcmp.eq.f32.partialorder %v70, inf
    %v75 = vsel %vm74, %v70, %v73
    %vm76 = vcmp.eq.f32.partialorder %v70, 0.0
    %v77 = vand.u32 %v70, 2147483648
    %v78 = vsel %vm76, %v77, %v75
    %v79 = vrsqrt.pop %v71
    %v80 = vmul.f32 %v71, %v79
    %vm81 = vcmp.eq.f32.partialorder %v71, inf
    %v82 = vsel %vm81, %v71, %v80
    %vm83 = vcmp.eq.f32.partialorder %v71, 0.0
    %v84 = vand.u32 %v71, 2147483648
    %v85 = vsel %vm83, %v84, %v82
    %v86 = vmul.f32 %v78, 1.3862944
    %v87 = vmul.f32 %v85, 1.3862944
    %v88 = vmul.f32 %v86, 1.442695
    %v89 = vpow.pop %v88
    %v90 = vmul.f32 %v87, 1.442695
    %v91 = vpow.pop %v90
    %v92 = vlog2.pop %v68
    %v93 = vmul.f32 %v92, 0.6931472
    %v94 = vlog2.pop %v69
    %v95 = vmul.f32 %v94, 0.6931472
    %v96 = vmul.f32 %v89, %v93
    %v97 = vmul.f32 %v91, %v95
    %p98 = scmp.eq.s32.totalorder 0, 0
    // Predicated region
    $region18: #{tpu_custom_call.1} parent=1 // pred_check
      %p99 = pneg %p98
    $region19: #{tpu_custom_call.1} parent=1 // pred_check_branch
      %101 = sbr.rel (%p99) target = $region21
    $region20: #{tpu_custom_call.1} parent=1 // pred_region
      %102 = vst [vmem:[#allocation2] sm:$0xff] 0.0
      %103 = vst [vmem:[#allocation3] sm:$0xff] 0.0
      %104 = vst [vmem:[#allocation4] sm:$0xff] 0.0
    $region21: #{tpu_custom_call.1} parent=1 // pred_fallthru
      _
    %v105 = vld [vmem:[#allocation2] sm:$0xff]
    %v106 = vadd.f32 %v62, %v63
    %v107 = vadd.f32 %v105, %v106
    %108 = vst [vmem:[#allocation2] sm:$0xff] %v107
    %v109 = vld [vmem:[#allocation3] sm:$0xff]
    %v110 = vmul.f32 %v96, %v62
    %v111 = vmul.f32 %v97, %v63
    %v112 = vadd.f32 %v110, %v111
    %v113 = vadd.f32 %v109, %v112
    %114 = vst [vmem:[#allocation3] sm:$0xff] %v113
    %v115 = vld [vmem:[#allocation4] sm:$0xff]
    %v116 = vadd.f32 %v96, %v97
    %v117 = vadd.f32 %v115, %v116
    %118 = vst [vmem:[#allocation4] sm:$0xff] %v117
    // Predicated region
    $region22: #{tpu_custom_call.1} parent=1 // pred_check
      %p119 = pneg %p98
    $region23: #{tpu_custom_call.1} parent=1 // pred_check_branch
      %121 = sbr.rel (%p119) target = $region25
    $region24: #{tpu_custom_call.1} parent=1 // pred_region
      %v122 = vld [vmem:[#allocation2] sm:$0xff]
      %123 = vadd.xlane.f32.xlu0 %v122
      %v124 = vpop.xlane.xlu0 %123
      %v125 = vrot.slane %v124, 4
      %v126 = vadd.f32 %v124, %v125
      %v127 = vrot.slane %v126, 2
      %v128 = vadd.f32 %v126, %v127
      %v129 = vrot.slane %v128, 1
      %v130 = vadd.f32 %v128, %v129
      %s131 = vtos %v130
      %s132 = scalar_lea.smem [#allocation10], 0
      %133 = sst [smem:[%s132]] %s131
      %v134 = vld [vmem:[#allocation3] sm:$0xff]
      %135 = vadd.xlane.f32.xlu0 %v134
      %v136 = vpop.xlane.xlu0 %135
      %v137 = vrot.slane %v136, 4
      %v138 = vadd.f32 %v136, %v137
      %v139 = vrot.slane %v138, 2
      %v140 = vadd.f32 %v138, %v139
      %v141 = vrot.slane %v140, 1
      %v142 = vadd.f32 %v140, %v141
      %s143 = vtos %v142
      %s144 = scalar_lea.smem [#allocation10], 1
      %145 = sst [smem:[%s144]] %s143
      %v146 = vld [vmem:[#allocation4] sm:$0xff]
      %147 = vadd.xlane.f32.xlu0 %v146
      %v148 = vpop.xlane.xlu0 %147
      %v149 = vrot.slane %v148, 4
      %v150 = vadd.f32 %v148, %v149
      %v151 = vrot.slane %v150, 2
      %v152 = vadd.f32 %v150, %v151
      %v153 = vrot.slane %v152, 1
      %v154 = vadd.f32 %v152, %v153
      %s155 = vtos %v154
      %s156 = scalar_lea.smem [#allocation10], 2
      %157 = sst [smem:[%s156]] %s155
    $region25: #{tpu_custom_call.1} parent=1 // pred_fallthru
      _
    // Predicated region
    $region26: #{tpu_custom_call.1} parent=1 // pred_check
      _
    $region27: #{tpu_custom_call.1} parent=1 // pred_check_branch
      %159 = sbr.rel (0) target = $region29
    $region28: #{tpu_custom_call.1} parent=1 // pred_region
      %s161 = ssub.s32 16, 16
      %162 = vsyncadd [#allocation7], %s161
      %165 = dma.smem_to_hbm [#allocation10], 16, %s2, [#allocation7]
    $region29: #{tpu_custom_call.1} parent=1 // pred_fallthru
      _
    // Predicated region
    $region30: #{tpu_custom_call.1} parent=1 // pred_check
      _
    $region31: #{tpu_custom_call.1} parent=1 // pred_check_branch
      %167 = sbr.rel (0) target = $region33
    $region32: #{tpu_custom_call.1} parent=1 // pred_region
      %168 = dma.done [#allocation7], 16
    $region33: #{tpu_custom_call.1} parent=1 // pred_fallthru
      _
    %169 = sfence
    %170 = vsyncpa [#allocation6], 1
    %171 = vsyncpa [#allocation9], 1
    %172 = vsyncpa [#allocation7], 1

</llo_original>
